<compile_context>
chip_gen: v7x
topology: tpu7x:2x2x1
jax: 0.10.0
libtpu: 0.0.40
codegen_flags: <defaults>
</compile_context>

<pallas_src>
import jax
import jax.numpy as jnp
from jax.experimental import pallas as pl
from jax.experimental.pallas import tpu as pltpu


def _mlp_kernel(x_ref, t_ref, w1x_ref, w1t_ref, b1_ref, w2_ref, b2_ref,
                w3_ref, b3_ref, o_ref):
    # x_ref: (tb, F) batch-major inputs; t_ref/o_ref: (1, tb) lane-dense rows.
    # ---- Layer 1: fused concat ---------------------------------------------
    # inputs @ W1[:F] on the MXU; the time column as a rank-1 VPU broadcast.
    h1 = jnp.dot(x_ref[...].astype(w1x_ref.dtype), w1x_ref[...],
                 preferred_element_type=jnp.float32)                # (tb, H)
    # time row -> column: one lanes->sublanes XLU relayout per tile.
    t_col = t_ref[...].astype(jnp.float32).T                        # (tb, 1)
    h1 = jnp.maximum(
        h1 + t_col * w1t_ref[...].astype(jnp.float32) + b1_ref[...], 0.0)

    # ---- Layer 2: H -> H on the MXU (f32 accumulation) ----------------------
    h2 = jnp.dot(h1.astype(w2_ref.dtype), w2_ref[...],
                 preferred_element_type=jnp.float32)                # (tb, H)
    h2 = jnp.maximum(h2 + b2_ref[...], 0.0)

    # ---- Layer 3: H -> 1 as VPU multiply + cross-lane sum, stored lane-dense
    w3 = w3_ref[...].astype(jnp.float32)                            # (1, H)
    col = jnp.sum(h2 * w3, axis=-1, keepdims=True)                  # (tb, 1)
    # column -> lane-dense row (XLU), add the SMEM scalar bias, store.
    o_ref[...] = (col.T + b3_ref[0, 0]).astype(o_ref.dtype)         # (1, tb)


def _round_up(x, m):
    return ((x + m - 1) // m) * m


def cox_time_net_forward(inputs, time, params, *, block_b=4096,
                         compute_dtype=None):
    """inputs: (B, F), time: (B, 1) -> (B, 1) float32.

    block_b: cap on the batch tile (rounded down to a multiple of 128 when
      more than one tile is needed, so the lane-dense time/output blocks stay
      (8,128)-aligned).  When B > 128 the tile is chosen so the grid has at
      least two steps (v7x megacore).  Per-row VMEM of the x tile is ~512 B
      (15 lanes padded to 128), so tb=4096 double-buffered is ~4 MiB.
    compute_dtype: e.g. jnp.bfloat16 — casts only the VMEM-resident matmul
      weights; pass natively-bf16 activations if you also want bf16 HBM
      traffic for x.
    """
    w1, b1, w2, b2, w3, b3 = params
    B, F = inputs.shape
    H = w1.shape[1]

    # Split W1 so torch.cat([inputs, time], dim=1) never materializes.
    w1x = w1[:F, :]                          # feature rows   (F, H)
    w1t = w1[F:F + 1, :]                     # time row       (1, H)
    w3r = w3.reshape(1, H)                   # final projection as a VPU row

    if compute_dtype is not None:
        # Only the tiny, VMEM-resident matmul weights are cast; activations
        # are cast in-kernel, so no extra HBM pass is spent re-writing them.
        w1x = w1x.astype(compute_dtype)
        w2 = w2.astype(compute_dtype)

    b1 = b1.reshape(1, H).astype(jnp.float32)
    b2 = b2.reshape(1, H).astype(jnp.float32)
    b3s = jnp.asarray(b3, jnp.float32).reshape(1, 1)   # scalar -> SMEM

    # Lane-dense layouts for the width-1 tensors (free, contiguous reshapes).
    t_row = time.reshape(1, B)

    # ---- batch tile selection -----------------------------------------------
    if B <= 128:
        tb = B                              # single full block (tiny batch)
    else:
        cap = max(128, (int(block_b) // 128) * 128)
        # >= 2 grid steps so both v7x TensorCores get work; 128-aligned tiles
        # keep the (1, tb) time/output blocks lane-dense and legal.
        tb = min(cap, _round_up(pl.cdiv(B, 2), 128))
    grid = (pl.cdiv(B, tb),)                # ragged tail handled by Pallas
                                            # (OOB output lanes are dropped).

    def _const(shape):
        nd = len(shape)
        return pl.BlockSpec(shape, lambda i: (0,) * nd)

    param_elems = F * H + H + H + H * H + H + H + 1
    cost = pl.CostEstimate(
        flops=2 * B * ((F + 1) * H + H * H + H),
        transcendentals=0,
        bytes_accessed=4 * (B * (F + 2) + param_elems),
    )

    out_row = pl.pallas_call(
        _mlp_kernel,
        out_shape=jax.ShapeDtypeStruct((1, B), jnp.float32),
        grid=grid,
        in_specs=[
            pl.BlockSpec((tb, F), lambda i: (i, 0)),     # inputs (streamed)
            pl.BlockSpec((1, tb), lambda i: (0, i)),     # time, lane-dense
            _const(w1x.shape),                           # W1 feature rows
            _const(w1t.shape),                           # W1 time row
            _const(b1.shape),
            _const(w2.shape),
            _const(b2.shape),
            _const(w3r.shape),
            pl.BlockSpec(memory_space=pltpu.MemorySpace.SMEM),   # b3 scalar
        ],
        out_specs=pl.BlockSpec((1, tb), lambda i: (0, i)),       # lane-dense
        compiler_params=pltpu.CompilerParams(
            dimension_semantics=("parallel",),           # shard batch on v7x
            vmem_limit_bytes=32 * 1024 * 1024),          # v5e-safe tile sweep
        cost_estimate=cost,
    )(inputs, t_row, w1x, w1t, b1, w2, b2, w3r, b3s)

    return out_row.reshape(B, 1)


def init_params(key, in_features, hidden_dim):
    """Deterministic parameter init mirroring the module's __init__ shapes.

    Linear1: (F+1 -> H), Linear2: (H -> H) use kaiming_normal(fan_out, relu)
    i.e. std = sqrt(2 / fan_out). Linear3: (H -> 1) PyTorch default-style.
    Weights stored transposed relative to torch ([in, out]) for x @ W.
    """
    d_in = in_features + 1
    k1, k2, k3, kb1, kb2, kb3 = jax.random.split(key, 6)

    std1 = (2.0 / hidden_dim) ** 0.5          # fan_out = hidden_dim
    std2 = (2.0 / hidden_dim) ** 0.5
    w1 = std1 * jax.random.normal(k1, (d_in, hidden_dim), jnp.float32)
    w2 = std2 * jax.random.normal(k2, (hidden_dim, hidden_dim), jnp.float32)

    bound3 = 1.0 / (hidden_dim ** 0.5)        # torch default uniform bound
    w3 = jax.random.uniform(k3, (hidden_dim, 1), jnp.float32, -bound3, bound3)

    bound1 = 1.0 / (d_in ** 0.5)
    bound2 = 1.0 / (hidden_dim ** 0.5)
    b1 = jax.random.uniform(kb1, (1, hidden_dim), jnp.float32, -bound1, bound1)
    b2 = jax.random.uniform(kb2, (1, hidden_dim), jnp.float32, -bound2, bound2)
    b3 = jax.random.uniform(kb3, (1, 1), jnp.float32, -bound3, bound3)
    return (w1, b1, w2, b2, w3, b3)


if __name__ == "__main__":
    B, F, H = 8, 15, 32                 # in_features=15 -> F+1=16 after concat
    key = jax.random.PRNGKey(0)
    kx, kt, kp = jax.random.split(key, 3)
    inputs = jax.random.normal(kx, (B, F), jnp.float32)
    time = jax.random.uniform(kt, (B, 1), jnp.float32)
    params = init_params(kp, F, H)
    w1, b1, w2, b2, w3, b3 = params

    def ref_tight(xin, tin):
        # Plain-JAX reference using the same algebraic decomposition
        # (fused concat + VPU final projection).
        r1 = jnp.maximum(xin @ w1[:F] + tin * w1[F:F + 1] + b1, 0.0)
        r2 = jnp.maximum(r1 @ w2 + b2, 0.0)
        return jnp.sum(r2 * w3.reshape(1, H), axis=-1, keepdims=True) + b3

    # --- small single-tile case ----------------------------------------------
    out = jax.block_until_ready(cox_time_net_forward(inputs, time, params))
    assert out.shape == (B, 1) and out.dtype == jnp.float32
    assert jnp.allclose(out, ref_tight(inputs, time), atol=1e-5, rtol=1e-5)

    # Semantic check against the literal PyTorch form (concat + 3 matmuls);
    # looser tolerance since XLA's default-precision MXU matmul may differ
    # from the kernel's exact-f32 VPU paths (time column, final projection).
    xcat = jnp.concatenate([inputs, time], axis=1)
    r = jnp.maximum(xcat @ w1 + b1, 0.0)
    r = jnp.maximum(r @ w2 + b2, 0.0)
    ref_sem = r @ w3 + b3
    assert jnp.allclose(out, ref_sem, atol=5e-2, rtol=5e-2)

    # --- multi-tile case with a ragged tail (exercises the lane-dense grid) --
    B2 = 300
    kx2, kt2 = jax.random.split(kx)
    inputs2 = jax.random.normal(kx2, (B2, F), jnp.float32)
    time2 = jax.random.uniform(kt2, (B2, 1), jnp.float32)
    out2 = jax.block_until_ready(
        cox_time_net_forward(inputs2, time2, params, block_b=128))
    assert out2.shape == (B2, 1)
    assert jnp.allclose(out2, ref_tight(inputs2, time2), atol=1e-5, rtol=1e-5)

    # --- bf16 matmul-weight mode (no wrapper-side activation casts) ----------
    out_bf16 = jax.block_until_ready(
        cox_time_net_forward(inputs, time, params, compute_dtype=jnp.bfloat16))
    assert out_bf16.shape == (B, 1) and out_bf16.dtype == jnp.float32
    assert jnp.allclose(out_bf16, out, atol=1e-1, rtol=1e-1)

    print("KERNEL_OK")
</pallas_src>

<mosaic_0001>
module attributes {stable_mosaic.version = 11 : i64} {
  func.func @_mlp_kernel(%arg0: i32, %arg1: memref<8x15xf32, #tpu.memory_space<vmem>>, %arg2: memref<1x8xf32, #tpu.memory_space<vmem>>, %arg3: memref<15x32xf32, #tpu.memory_space<vmem>>, %arg4: memref<1x32xf32, #tpu.memory_space<vmem>>, %arg5: memref<1x32xf32, #tpu.memory_space<vmem>>, %arg6: memref<32x32xf32, #tpu.memory_space<vmem>>, %arg7: memref<1x32xf32, #tpu.memory_space<vmem>>, %arg8: memref<1x32xf32, #tpu.memory_space<vmem>>, %arg9: memref<1x1xf32, #tpu.memory_space<smem>>, %arg10: memref<1x8xf32, #tpu.memory_space<vmem>>) attributes {dimension_semantics = [#tpu.dimension_semantics<parallel>], iteration_bounds = array<i64: 1>, scalar_prefetch = 0 : i64, scratch_operands = 0 : i64, tpu.core_type = #tpu.core_type<tc>, window_params = [{transform_indices = @transform_0, window_bounds = array<i64: 8, 15>}, {transform_indices = @transform_1, window_bounds = array<i64: 1, 8>}, {pipeline_mode = #tpu.pipeline_mode<synchronous>, transform_indices = @transform_2, window_bounds = array<i64: 15, 32>}, {pipeline_mode = #tpu.pipeline_mode<synchronous>, transform_indices = @transform_3, window_bounds = array<i64: 1, 32>}, {pipeline_mode = #tpu.pipeline_mode<synchronous>, transform_indices = @transform_4, window_bounds = array<i64: 1, 32>}, {pipeline_mode = #tpu.pipeline_mode<synchronous>, transform_indices = @transform_5, window_bounds = array<i64: 32, 32>}, {pipeline_mode = #tpu.pipeline_mode<synchronous>, transform_indices = @transform_6, window_bounds = array<i64: 1, 32>}, {pipeline_mode = #tpu.pipeline_mode<synchronous>, transform_indices = @transform_7, window_bounds = array<i64: 1, 32>}, {transform_indices = @transform_8, window_bounds = array<i64: 1, 1>}, {transform_indices = @transform_9, window_bounds = array<i64: 1, 8>}]} {
    %c0 = arith.constant 0 : index
    %c0_0 = arith.constant 0 : index
    %0 = vector.load %arg1[%c0, %c0_0] : memref<8x15xf32, #tpu.memory_space<vmem>>, vector<8x15xf32>
    %c0_1 = arith.constant 0 : index
    %c0_2 = arith.constant 0 : index
    %1 = vector.load %arg3[%c0_1, %c0_2] : memref<15x32xf32, #tpu.memory_space<vmem>>, vector<15x32xf32>
    %cst = arith.constant dense<0.000000e+00> : vector<8x32xf32>
    %2 = tpu.matmul %0, %1, %cst {dimension_numbers = #tpu.dot_dimension_numbers<[1], [0], [0], [1], [0, 0, 1, 1], [], []>} : vector<8x15xf32>, vector<15x32xf32>, vector<8x32xf32> -> vector<8x32xf32>
    %c0_3 = arith.constant 0 : index
    %c0_4 = arith.constant 0 : index
    %3 = vector.load %arg2[%c0_3, %c0_4] : memref<1x8xf32, #tpu.memory_space<vmem>>, vector<1x8xf32>
    %4 = tpu.transpose %3, [1, 0] : vector<1x8xf32> -> vector<8x1xf32>
    %c0_5 = arith.constant 0 : index
    %c0_6 = arith.constant 0 : index
    %5 = vector.load %arg4[%c0_5, %c0_6] : memref<1x32xf32, #tpu.memory_space<vmem>>, vector<1x32xf32>
    %6 = vector.broadcast %4 : vector<8x1xf32> to vector<8x32xf32>
    %7 = vector.broadcast %5 : vector<1x32xf32> to vector<8x32xf32>
    %8 = arith.mulf %6, %7 : vector<8x32xf32>
    %9 = arith.addf %2, %8 : vector<8x32xf32>
    %c0_7 = arith.constant 0 : index
    %c0_8 = arith.constant 0 : index
    %10 = vector.load %arg5[%c0_7, %c0_8] : memref<1x32xf32, #tpu.memory_space<vmem>>, vector<1x32xf32>
    %11 = vector.broadcast %10 : vector<1x32xf32> to vector<8x32xf32>
    %12 = arith.addf %9, %11 : vector<8x32xf32>
    %cst_9 = arith.constant 0.000000e+00 : f32
    %13 = vector.broadcast %cst_9 : f32 to vector<8x32xf32>
    %14 = arith.maximumf %12, %13 : vector<8x32xf32>
    %c0_10 = arith.constant 0 : index
    %c0_11 = arith.constant 0 : index
    %15 = vector.load %arg6[%c0_10, %c0_11] : memref<32x32xf32, #tpu.memory_space<vmem>>, vector<32x32xf32>
    %cst_12 = arith.constant dense<0.000000e+00> : vector<8x32xf32>
    %16 = tpu.matmul %14, %15, %cst_12 {dimension_numbers = #tpu.dot_dimension_numbers<[1], [0], [0], [1], [0, 0, 1, 1], [], []>} : vector<8x32xf32>, vector<32x32xf32>, vector<8x32xf32> -> vector<8x32xf32>
    %c0_13 = arith.constant 0 : index
    %c0_14 = arith.constant 0 : index
    %17 = vector.load %arg7[%c0_13, %c0_14] : memref<1x32xf32, #tpu.memory_space<vmem>>, vector<1x32xf32>
    %18 = vector.broadcast %17 : vector<1x32xf32> to vector<8x32xf32>
    %19 = arith.addf %16, %18 : vector<8x32xf32>
    %cst_15 = arith.constant 0.000000e+00 : f32
    %20 = vector.broadcast %cst_15 : f32 to vector<8x32xf32>
    %21 = arith.maximumf %19, %20 : vector<8x32xf32>
    %c0_16 = arith.constant 0 : index
    %c0_17 = arith.constant 0 : index
    %22 = vector.load %arg8[%c0_16, %c0_17] : memref<1x32xf32, #tpu.memory_space<vmem>>, vector<1x32xf32>
    %23 = vector.broadcast %22 : vector<1x32xf32> to vector<8x32xf32>
    %24 = arith.mulf %21, %23 : vector<8x32xf32>
    %cst_18 = arith.constant dense<0.000000e+00> : vector<8xf32>
    %25 = vector.multi_reduction <add>, %24, %cst_18 [1] : vector<8x32xf32> to vector<8xf32>
    %26 = vector.shape_cast %25 : vector<8xf32> to vector<8x1xf32>
    %27 = tpu.transpose %26, [1, 0] : vector<8x1xf32> -> vector<1x8xf32>
    %c0_19 = arith.constant 0 : index
    %c0_20 = arith.constant 0 : index
    %28 = memref.load %arg9[%c0_19, %c0_20] : memref<1x1xf32, #tpu.memory_space<smem>>
    %29 = vector.broadcast %28 : f32 to vector<1x8xf32>
    %30 = arith.addf %27, %29 : vector<1x8xf32>
    %c0_21 = arith.constant 0 : index
    %c0_22 = arith.constant 0 : index
    %31 = vector.load %arg10[%c0_21, %c0_22] : memref<1x8xf32, #tpu.memory_space<vmem>>, vector<1x8xf32>
    tpu.vector_store %arg10[%c0_21, %c0_22], %30 {strides = array<i32>} : memref<1x8xf32, #tpu.memory_space<vmem>>, vector<1x8xf32>,
    return
  }
  func.func @transform_0(%arg0: i32) -> (i32, i32) {
    %c0_i32 = arith.constant 0 : i32
    %c0_i32_0 = arith.constant 0 : i32
    return %arg0, %c0_i32 : i32, i32
  }
  func.func @transform_1(%arg0: i32) -> (i32, i32) {
    %c0_i32 = arith.constant 0 : i32
    %c0_i32_0 = arith.constant 0 : i32
    return %c0_i32, %arg0 : i32, i32
  }
  func.func @transform_2(%arg0: i32) -> (i32, i32) {
    %c0_i32 = arith.constant 0 : i32
    %c0_i32_0 = arith.constant 0 : i32
    %c0_i32_1 = arith.constant 0 : i32
    return %c0_i32, %c0_i32_0 : i32, i32
  }
  func.func @transform_3(%arg0: i32) -> (i32, i32) {
    %c0_i32 = arith.constant 0 : i32
    %c0_i32_0 = arith.constant 0 : i32
    %c0_i32_1 = arith.constant 0 : i32
    return %c0_i32, %c0_i32_0 : i32, i32
  }
  func.func @transform_4(%arg0: i32) -> (i32, i32) {
    %c0_i32 = arith.constant 0 : i32
    %c0_i32_0 = arith.constant 0 : i32
    %c0_i32_1 = arith.constant 0 : i32
    return %c0_i32, %c0_i32_0 : i32, i32
  }
  func.func @transform_5(%arg0: i32) -> (i32, i32) {
    %c0_i32 = arith.constant 0 : i32
    %c0_i32_0 = arith.constant 0 : i32
    %c0_i32_1 = arith.constant 0 : i32
    return %c0_i32, %c0_i32_0 : i32, i32
  }
  func.func @transform_6(%arg0: i32) -> (i32, i32) {
    %c0_i32 = arith.constant 0 : i32
    %c0_i32_0 = arith.constant 0 : i32
    %c0_i32_1 = arith.constant 0 : i32
    return %c0_i32, %c0_i32_0 : i32, i32
  }
  func.func @transform_7(%arg0: i32) -> (i32, i32) {
    %c0_i32 = arith.constant 0 : i32
    %c0_i32_0 = arith.constant 0 : i32
    %c0_i32_1 = arith.constant 0 : i32
    return %c0_i32, %c0_i32_0 : i32, i32
  }
  func.func @transform_8(%arg0: i32) -> (i32, i32) {
    %c0_i32 = arith.constant 0 : i32
    %c0_i32_0 = arith.constant 0 : i32
    %c0_i32_1 = arith.constant 0 : i32
    return %c0_i32, %c0_i32_0 : i32, i32
  }
  func.func @transform_9(%arg0: i32) -> (i32, i32) {
    %c0_i32 = arith.constant 0 : i32
    %c0_i32_0 = arith.constant 0 : i32
    return %c0_i32, %arg0 : i32, i32
  }
}

</mosaic_0001>

<llo_original>
// kernel: tpu_custom_call.1
$region0: #{tpu_custom_call.1}
  #allocation0 [shape = 'u32[]', space=smem, size = 0x4, offset = 0x4, fixed_abs, tag = 'smem constant byte address 0x4 - core index']
  #allocation1 [shape = 'u32[144,128]{1,0:T(1,128)}', space=vmem, size = 0x12000, scoped, tag = 'internal scratch']
  #allocation2 [shape = 'f32[1,1]{1,0:T(1,128)S(6)}', space=smem, size = 0x200, scoped, tag = 'scoped memory for tpu_custom_call.1']
  %s0 = inlined_call_operand.hbm [shape: f32[8,15], index: 0, kind: input, shape index: {}]
  %s1 = inlined_call_operand.vmem [shape: f32[1,8], index: 1, kind: input, shape index: {}]
  %s2 = inlined_call_operand.hbm [shape: f32[15,32], index: 2, kind: input, shape index: {}]
  %s3 = inlined_call_operand.vmem [shape: f32[1,32], index: 3, kind: input, shape index: {}]
  %s4 = inlined_call_operand.vmem [shape: f32[1,32], index: 4, kind: input, shape index: {}]
  %s5 = inlined_call_operand.hbm [shape: f32[32,32], index: 5, kind: input, shape index: {}]
  %s6 = inlined_call_operand.vmem [shape: f32[1,32], index: 6, kind: input, shape index: {}]
  %s7 = inlined_call_operand.vmem [shape: f32[1,32], index: 7, kind: input, shape index: {}]
  %s8 = inlined_call_operand.<no memory space> [shape: f32[1,1], index: 8, kind: input, shape index: {}]
  %s9 = inlined_call_operand.hbm [shape: f32[1,8], index: 9, kind: output, shape index: {}]
  %s10 = sld [smem:[#allocation0]]
  $region58: #{tpu_custom_call.1} parent=0
    _
  %s12 = ssub.s32 1, %s10
  %s13 = scalar_select 0, %s12, %s10
  %14 = sst [smem:[#allocation2]] %s8
  $region1: #{tpu_custom_call.1} parent=0
    #allocation3 [shape = 'u8[4096]{0}', space=vmem, size = 0x1000, scoped, tag = 'input window, operand 0, single buffered']
    #allocation4 [shape = 's32[1]{0}', space=sflag, size = 0x4, scoped, tag = 'scoped memory for tpu_custom_call.1']
    #allocation5 [shape = 's32[1]{0}', space=sflag, size = 0x4, scoped, tag = 'scoped memory for tpu_custom_call.1']
    #allocation6 [shape = 'u8[8192]{0}', space=vmem, size = 0x2000, scoped, tag = 'input window, operand 2, single buffered']
    #allocation7 [shape = 's32[1]{0}', space=sflag, size = 0x4, scoped, tag = 'scoped memory for tpu_custom_call.1']
    #allocation8 [shape = 'u8[16384]{0}', space=vmem, size = 0x4000, scoped, tag = 'input window, operand 5, single buffered']
    #allocation9 [shape = 'u8[512]{0}', space=vmem, size = 0x400, scoped, tag = 'output window, operand 0, single buffered']
    %15 = vsyncpa [#allocation4], 0
    %16 = vsyncpa [#allocation7], 0
    %17 = vsyncpa [#allocation5], 0
    // Predicated region
    $region2: #{tpu_custom_call.1} parent=1 // pred_check
      _
    $region3: #{tpu_custom_call.1} parent=1 // pred_check_branch
      %19 = sbr.rel (0) target = $region5
    $region4: #{tpu_custom_call.1} parent=1 // pred_region
      %s21 = ssub.s32 128, 128
      %22 = vsyncadd [#allocation4], %s21
      %s24 = sshll.u32 [#allocation3], 4
      %s25 = int_to_ptr.vmem [resolvable:$true] %s24
      %27 = dma.hbm_to_vmem [thread:$0]  %s0, 128, %s25, [#allocation4]
    $region5: #{tpu_custom_call.1} parent=1 // pred_fallthru
      _
    // Predicated region
    $region6: #{tpu_custom_call.1} parent=1 // pred_check
      _
    $region7: #{tpu_custom_call.1} parent=1 // pred_check_branch
      %29 = sbr.rel (0) target = $region9
    $region8: #{tpu_custom_call.1} parent=1 // pred_region
      _
    $region9: #{tpu_custom_call.1} parent=1 // pred_fallthru
      _
    // Predicated region
    $region10: #{tpu_custom_call.1} parent=1 // pred_check
      _
    $region11: #{tpu_custom_call.1} parent=1 // pred_check_branch
      %31 = sbr.rel (0) target = $region13
    $region12: #{tpu_custom_call.1} parent=1 // pred_region
      %s33 = ssub.s32 256, 256
      %34 = vsyncadd [#allocation7], %s33
      %s35 = sshll.u32 [#allocation6], 4
      %s36 = int_to_ptr.vmem [resolvable:$true] %s35
      %41 = dma.hbm_to_vmem [thread:$0]  %s2, 256, %s36, [#allocation7], 128, 128, 8
    $region13: #{tpu_custom_call.1} parent=1 // pred_fallthru
      _
    // Predicated region
    $region14: #{tpu_custom_call.1} parent=1 // pred_check
      _
    $region15: #{tpu_custom_call.1} parent=1 // pred_check_branch
      %43 = sbr.rel (0) target = $region17
    $region16: #{tpu_custom_call.1} parent=1 // pred_region
      _
    $region17: #{tpu_custom_call.1} parent=1 // pred_fallthru
      _
    // Predicated region
    $region18: #{tpu_custom_call.1} parent=1 // pred_check
      _
    $region19: #{tpu_custom_call.1} parent=1 // pred_check_branch
      %45 = sbr.rel (0) target = $region21
    $region20: #{tpu_custom_call.1} parent=1 // pred_region
      _
    $region21: #{tpu_custom_call.1} parent=1 // pred_fallthru
      _
    // Predicated region
    $region22: #{tpu_custom_call.1} parent=1 // pred_check
      _
    $region23: #{tpu_custom_call.1} parent=1 // pred_check_branch
      %47 = sbr.rel (0) target = $region25
    $region24: #{tpu_custom_call.1} parent=1 // pred_region
      %s49 = ssub.s32 512, 512
      %50 = vsyncadd [#allocation7], %s49
      %s51 = sshll.u32 [#allocation8], 4
      %s52 = int_to_ptr.vmem [resolvable:$true] %s51
      %57 = dma.hbm_to_vmem [thread:$0]  %s5, 512, %s52, [#allocation7], 128, 128, 8
    $region25: #{tpu_custom_call.1} parent=1 // pred_fallthru
      _
    // Predicated region
    $region26: #{tpu_custom_call.1} parent=1 // pred_check
      _
    $region27: #{tpu_custom_call.1} parent=1 // pred_check_branch
      %59 = sbr.rel (0) target = $region29
    $region28: #{tpu_custom_call.1} parent=1 // pred_region
      _
    $region29: #{tpu_custom_call.1} parent=1 // pred_fallthru
      _
    // Predicated region
    $region30: #{tpu_custom_call.1} parent=1 // pred_check
      _
    $region31: #{tpu_custom_call.1} parent=1 // pred_check_branch
      %61 = sbr.rel (0) target = $region33
    $region32: #{tpu_custom_call.1} parent=1 // pred_region
      _
    $region33: #{tpu_custom_call.1} parent=1 // pred_fallthru
      _
    // Predicated region
    $region34: #{tpu_custom_call.1} parent=1 // pred_check
      _
    $region35: #{tpu_custom_call.1} parent=1 // pred_check_branch
      %63 = sbr.rel (0) target = $region37
    $region36: #{tpu_custom_call.1} parent=1 // pred_region
      _
    $region37: #{tpu_custom_call.1} parent=1 // pred_fallthru
      _
    // Predicated region
    $region38: #{tpu_custom_call.1} parent=1 // pred_check
      _
    $region39: #{tpu_custom_call.1} parent=1 // pred_check_branch
      %65 = sbr.rel (0) target = $region41
    $region40: #{tpu_custom_call.1} parent=1 // pred_region
      %66 = dma.done [#allocation4], 128
    $region41: #{tpu_custom_call.1} parent=1 // pred_fallthru
      _
    // Predicated region
    $region42: #{tpu_custom_call.1} parent=1 // pred_check
      _
    $region43: #{tpu_custom_call.1} parent=1 // pred_check_branch
      %68 = sbr.rel (0) target = $region45
    $region44: #{tpu_custom_call.1} parent=1 // pred_region
      %69 = dma.done [#allocation7], 256
    $region45: #{tpu_custom_call.1} parent=1 // pred_fallthru
      _
    // Predicated region
    $region46: #{tpu_custom_call.1} parent=1 // pred_check
      _
    $region47: #{tpu_custom_call.1} parent=1 // pred_check_branch
      %71 = sbr.rel (0) target = $region49
    $region48: #{tpu_custom_call.1} parent=1 // pred_region
      %72 = dma.done [#allocation7], 512
    $region49: #{tpu_custom_call.1} parent=1 // pred_fallthru
      _
    %v73 = vld [vmem:[#allocation3] sm:$0xff]
    %v74 = vld [vmem:[#allocation6] sm:$0xff]
    %v75 = vld [vmem:[#allocation6 + $0x8] sm:$0x7f]
    %v76 = vld [vmem:[%s1] sm:$0x1]
    %77 = vxpose.xlu0.b32.start [1/16] %v76, 128
    %78 = vxpose.xlu0.b32.cont [2/16] 0.0, 128
    %79 = vxpose.xlu0.b32.cont [3/16] 0.0, 128
    %80 = vxpose.xlu0.b32.cont [4/16] 0.0, 128
    %81 = vxpose.xlu0.b32.cont [5/16] 0.0, 128
    %82 = vxpose.xlu0.b32.cont [6/16] 0.0, 128
    %83 = vxpose.xlu0.b32.cont [7/16] 0.0, 128
    %84 = vxpose.xlu0.b32.cont [8/16] 0.0, 128
    %85 = vxpose.xlu0.b32.cont [9/16] 0.0, 128
    %86 = vxpose.xlu0.b32.cont [10/16] 0.0, 128
    %87 = vxpose.xlu0.b32.cont [11/16] 0.0, 128
    %88 = vxpose.xlu0.b32.cont [12/16] 0.0, 128
    %89 = vxpose.xlu0.b32.cont [13/16] 0.0, 128
    %90 = vxpose.xlu0.b32.cont [14/16] 0.0, 128
    %91 = vxpose.xlu0.b32.cont [15/16] 0.0, 128
    %92 = vxpose.xlu0.b32.end [16/16] 0.0, 128
    %v93 = vpop.trf.xlu0
    %v94 = vpop.trf.xlu0
    %v95 = vpop.trf.xlu0
    %v96 = vpop.trf.xlu0
    %v97 = vpop.trf.xlu0
    %v98 = vpop.trf.xlu0
    %v99 = vpop.trf.xlu0
    %v100 = vpop.trf.xlu0
    %v101 = vpop.trf.xlu0
    %v102 = vpop.trf.xlu0
    %v103 = vpop.trf.xlu0
    %v104 = vpop.trf.xlu0
    %v105 = vpop.trf.xlu0
    %v106 = vpop.trf.xlu0
    %v107 = vpop.trf.xlu0
    %v108 = vpop.trf.xlu0
    %v109 = vld [vmem:[%s3] sm:$0x1]
    %111 = vset.pattern.permute.xlu0 0
    %112 = vperm.xlu0 %111, %v93
    %v113 = vpop.permute.xlu0 %112
    %v116 = vlaneseq
    %v117 = vshrl.u32 %v116, 7
    %v118 = vsub.s32 0, %v117
    %v119 = vrot.slane %v109, %v118
    %v121 = vmul.f32 %v113, %v119
    %vm122 = vcmask 121856
    %v124 = vsel %vm122, %v73, 0
    %vm126 = vcmask 1046528
    %v128 = vsel %vm126, %v75, 0
    %130 = vmatprep.subr.mxu0 0.0
    %131 = vmatpush1.msra.mxu0 %v74
    %132 = vmatprep.subr.mxu0 0.0
    %133 = vmatpush1.msra.mxu0 %v128
    %134 = vmatprep.subr.mxu0 0.0
    %135 = vmatpush1.msra.mxu0 0.0
    %136 = vmatprep.subr.mxu0 0.0
    %137 = vmatpush1.msra.mxu0 0.0
    %138 = vmatprep.subr.mxu0 0.0
    %139 = vmatpush1.msra.mxu0 0.0
    %140 = vmatprep.subr.mxu0 0.0
    %141 = vmatpush1.msra.mxu0 0.0
    %142 = vmatprep.subr.mxu0 0.0
    %143 = vmatpush1.msra.mxu0 0.0
    %144 = vmatprep.subr.mxu0 0.0
    %145 = vmatpush1.msra.mxu0 0.0
    %146 = vmatprep.subr.mxu0 0.0
    %147 = vmatpush1.msra.mxu0 0.0
    %148 = vmatprep.subr.mxu0 0.0
    %149 = vmatpush1.msra.mxu0 0.0
    %150 = vmatprep.subr.mxu0 0.0
    %151 = vmatpush1.msra.mxu0 0.0
    %152 = vmatprep.subr.mxu0 0.0
    %153 = vmatpush1.msra.mxu0 0.0
    %154 = vmatprep.subr.mxu0 0.0
    %155 = vmatpush1.msra.mxu0 0.0
    %156 = vmatprep.subr.mxu0 0.0
    %157 = vmatpush1.msra.mxu0 0.0
    %158 = vmatprep.subr.mxu0 0.0
    %159 = vmatpush1.msra.mxu0 0.0
    %160 = vmatprep.subr.mxu0 0.0
    %161 = vmatpush1.msra.mxu0 0.0
    %162 = vmatprep.subr.mxu0 0.0
    %163 = vmatpush1.msra.mxu0 0.0
    %164 = vmatprep.subr.mxu0 0.0
    %165 = vmatpush1.msra.mxu0 0.0
    %166 = vmatprep.subr.mxu0 0.0
    %167 = vmatpush1.msra.mxu0 0.0
    %168 = vmatprep.subr.mxu0 0.0
    %169 = vmatpush1.msra.mxu0 0.0
    %170 = vmatprep.subr.mxu0 0.0
    %171 = vmatpush1.msra.mxu0 0.0
    %172 = vmatprep.subr.mxu0 0.0
    %173 = vmatpush1.msra.mxu0 0.0
    %174 = vmatprep.subr.mxu0 0.0
    %175 = vmatpush1.msra.mxu0 0.0
    %176 = vmatprep.subr.mxu0 0.0
    %177 = vmatpush1.msra.mxu0 0.0
    %178 = vmatprep.subr.mxu0 0.0
    %179 = vmatpush1.msra.mxu0 0.0
    %180 = vmatprep.subr.mxu0 0.0
    %181 = vmatpush1.msra.mxu0 0.0
    %182 = vmatprep.subr.mxu0 0.0
    %183 = vmatpush1.msra.mxu0 0.0
    %184 = vmatprep.subr.mxu0 0.0
    %185 = vmatpush1.msra.mxu0 0.0
    %186 = vmatprep.subr.mxu0 0.0
    %187 = vmatpush1.msra.mxu0 0.0
    %188 = vmatprep.subr.mxu0 0.0
    %189 = vmatpush1.msra.mxu0 0.0
    %190 = vmatprep.subr.mxu0 0.0
    %191 = vmatpush1.msra.mxu0 0.0
    %192 = vmatprep.subr.mxu0 0.0
    %193 = vmatpush1.msra.mxu0 0.0
    %194 = vmatprep.mubr.f32.mxu0 0.0
    %195 = vmatmul.mubr.f32.gmra.mrb[0].mxu0 %v124
    %v196 = vpop.f32.mrb[0].mxu0
    %v197 = vadd.f32 %v121, %v196
    %v198 = vpop.f32.mrb[0].mxu0
    %199 = vdwg.mxu0
    %v200 = vld [vmem:[%s4] sm:$0x1]
    %v202 = vlaneseq
    %v203 = vshrl.u32 %v202, 7
    %v204 = vsub.s32 0, %v203
    %v205 = vrot.slane %v200, %v204
    %v207 = vadd.f32 %v197, %v205
    %v208 = vmax.f32 %v207, 0.0
    %v209 = vld [vmem:[#allocation8] sm:$0xff]
    %v210 = vld [vmem:[#allocation8 + $0x8] sm:$0xff]
    %v211 = vld [vmem:[#allocation8 + $0x10] sm:$0xff]
    %v212 = vld [vmem:[#allocation8 + $0x18] sm:$0xff]
    %v213 = vld [vmem:[%s6] sm:$0x1]
    %v215 = vlaneseq
    %v216 = vshrl.u32 %v215, 7
    %v217 = vsub.s32 0, %v216
    %v218 = vrot.slane %v213, %v217
    %vm220 = vcmask 261120
    %v222 = vsel %vm220, %v208, 0
    %224 = vmatprep.subr.mxu0 0.0
    %225 = vmatpush1.msra.mxu0 %v209
    %226 = vmatprep.subr.mxu0 0.0
    %227 = vmatpush1.msra.mxu0 %v210
    %228 = vmatprep.subr.mxu0 0.0
    %229 = vmatpush1.msra.mxu0 %v211
    %230 = vmatprep.subr.mxu0 0.0
    %231 = vmatpush1.msra.mxu0 %v212
    %232 = vmatprep.subr.mxu0 0.0
    %233 = vmatpush1.msra.mxu0 0.0
    %234 = vmatprep.subr.mxu0 0.0
    %235 = vmatpush1.msra.mxu0 0.0
    %236 = vmatprep.subr.mxu0 0.0
    %237 = vmatpush1.msra.mxu0 0.0
    %238 = vmatprep.subr.mxu0 0.0
    %239 = vmatpush1.msra.mxu0 0.0
    %240 = vmatprep.subr.mxu0 0.0
    %241 = vmatpush1.msra.mxu0 0.0
    %242 = vmatprep.subr.mxu0 0.0
    %243 = vmatpush1.msra.mxu0 0.0
    %244 = vmatprep.subr.mxu0 0.0
    %245 = vmatpush1.msra.mxu0 0.0
    %246 = vmatprep.subr.mxu0 0.0
    %247 = vmatpush1.msra.mxu0 0.0
    %248 = vmatprep.subr.mxu0 0.0
    %249 = vmatpush1.msra.mxu0 0.0
    %250 = vmatprep.subr.mxu0 0.0
    %251 = vmatpush1.msra.mxu0 0.0
    %252 = vmatprep.subr.mxu0 0.0
    %253 = vmatpush1.msra.mxu0 0.0
    %254 = vmatprep.subr.mxu0 0.0
    %255 = vmatpush1.msra.mxu0 0.0
    %256 = vmatprep.subr.mxu0 0.0
    %257 = vmatpush1.msra.mxu0 0.0
    %258 = vmatprep.subr.mxu0 0.0
    %259 = vmatpush1.msra.mxu0 0.0
    %260 = vmatprep.subr.mxu0 0.0
    %261 = vmatpush1.msra.mxu0 0.0
    %262 = vmatprep.subr.mxu0 0.0
    %263 = vmatpush1.msra.mxu0 0.0
    %264 = vmatprep.subr.mxu0 0.0
    %265 = vmatpush1.msra.mxu0 0.0
    %266 = vmatprep.subr.mxu0 0.0
    %267 = vmatpush1.msra.mxu0 0.0
    %268 = vmatprep.subr.mxu0 0.0
    %269 = vmatpush1.msra.mxu0 0.0
    %270 = vmatprep.subr.mxu0 0.0
    %271 = vmatpush1.msra.mxu0 0.0
    %272 = vmatprep.subr.mxu0 0.0
    %273 = vmatpush1.msra.mxu0 0.0
    %274 = vmatprep.subr.mxu0 0.0
    %275 = vmatpush1.msra.mxu0 0.0
    %276 = vmatprep.subr.mxu0 0.0
    %277 = vmatpush1.msra.mxu0 0.0
    %278 = vmatprep.subr.mxu0 0.0
    %279 = vmatpush1.msra.mxu0 0.0
    %280 = vmatprep.subr.mxu0 0.0
    %281 = vmatpush1.msra.mxu0 0.0
    %282 = vmatprep.subr.mxu0 0.0
    %283 = vmatpush1.msra.mxu0 0.0
    %284 = vmatprep.subr.mxu0 0.0
    %285 = vmatpush1.msra.mxu0 0.0
    %286 = vmatprep.subr.mxu0 0.0
    %287 = vmatpush1.msra.mxu0 0.0
    %288 = vmatprep.mubr.f32.mxu0 0.0
    %289 = vmatmul.mubr.f32.gmra.mrb[0].mxu0 %v222
    %v290 = vpop.f32.mrb[0].mxu0
    %v291 = vadd.f32 %v218, %v290
    %v292 = vpop.f32.mrb[0].mxu0
    %293 = vdwg.mxu0
    %v294 = vmax.f32 %v291, 0.0
    %v295 = vld [vmem:[%s7] sm:$0x1]
    %v297 = vlaneseq
    %v298 = vshrl.u32 %v297, 7
    %v299 = vsub.s32 0, %v298
    %v300 = vrot.slane %v295, %v299
    %v302 = vmul.f32 %v294, %v300
    %v303 = vsel %vm220, %v302, 0.0
    %304 = vadd.xlane.f32.xlu0 %v303
    %v305 = vpop.xlane.xlu0 %304
    %306 = vxpose.xlu0.b32.start [1/16] %v305, 128
    %307 = vxpose.xlu0.b32.cont [2/16] 0.0, 128
    %308 = vxpose.xlu0.b32.cont [3/16] 0.0, 128
    %309 = vxpose.xlu0.b32.cont [4/16] 0.0, 128
    %310 = vxpose.xlu0.b32.cont [5/16] 0.0, 128
    %311 = vxpose.xlu0.b32.cont [6/16] 0.0, 128
    %312 = vxpose.xlu0.b32.cont [7/16] 0.0, 128
    %313 = vxpose.xlu0.b32.cont [8/16] 0.0, 128
    %314 = vxpose.xlu0.b32.cont [9/16] 0.0, 128
    %315 = vxpose.xlu0.b32.cont [10/16] 0.0, 128
    %316 = vxpose.xlu0.b32.cont [11/16] 0.0, 128
    %317 = vxpose.xlu0.b32.cont [12/16] 0.0, 128
    %318 = vxpose.xlu0.b32.cont [13/16] 0.0, 128
    %319 = vxpose.xlu0.b32.cont [14/16] 0.0, 128
    %320 = vxpose.xlu0.b32.cont [15/16] 0.0, 128
    %321 = vxpose.xlu0.b32.end [16/16] 0.0, 128
    %v322 = vpop.trf.xlu0
    %v323 = vpop.trf.xlu0
    %v324 = vpop.trf.xlu0
    %v325 = vpop.trf.xlu0
    %v326 = vpop.trf.xlu0
    %v327 = vpop.trf.xlu0
    %v328 = vpop.trf.xlu0
    %v329 = vpop.trf.xlu0
    %v330 = vpop.trf.xlu0
    %v331 = vpop.trf.xlu0
    %v332 = vpop.trf.xlu0
    %v333 = vpop.trf.xlu0
    %v334 = vpop.trf.xlu0
    %v335 = vpop.trf.xlu0
    %v336 = vpop.trf.xlu0
    %v337 = vpop.trf.xlu0
    %s338 = sld [smem:[#allocation2]]
    %v339 = vstv %s338
    %v340 = vadd.f32 %v322, %v339
    %vm341 = vcmask 57344
    %342 = vst.msk [vmem:[#allocation9] sm:$0x1] %vm341, %v340
    // Predicated region
    $region50: #{tpu_custom_call.1} parent=1 // pred_check
      _
    $region51: #{tpu_custom_call.1} parent=1 // pred_check_branch
      %344 = sbr.rel (0) target = $region53
    $region52: #{tpu_custom_call.1} parent=1 // pred_region
      %s346 = ssub.s32 16, 16
      %347 = vsyncadd [#allocation5], %s346
      %s349 = sshll.u32 [#allocation9], 4
      %s350 = int_to_ptr.vmem [resolvable:$true] %s349
      %352 = dma.vmem_to_hbm [thread:$0]  %s350, 16, %s9, [#allocation5]
    $region53: #{tpu_custom_call.1} parent=1 // pred_fallthru
      _
    // Predicated region
    $region54: #{tpu_custom_call.1} parent=1 // pred_check
      _
    $region55: #{tpu_custom_call.1} parent=1 // pred_check_branch
      %354 = sbr.rel (0) target = $region57
    $region56: #{tpu_custom_call.1} parent=1 // pred_region
      %355 = dma.done [#allocation5], 16
    $region57: #{tpu_custom_call.1} parent=1 // pred_fallthru
      _
    %356 = vsyncpa [#allocation4], 1
    %357 = vsyncpa [#allocation7], 1
    %358 = vsyncpa [#allocation5], 1

</llo_original>
